<compile_context>
chip_gen: v7x
topology: tpu7x:2x2x1
jax: 0.10.0
libtpu: 0.0.40
codegen_flags: <defaults>
</compile_context>

<pallas_src>
import functools

import jax
import jax.numpy as jnp
from jax import lax
from jax.experimental import pallas as pl
from jax.experimental.pallas import tpu as pltpu

LN_EPS = 1e-5  # PyTorch nn.LayerNorm default


# ----------------------------------------------------------------------------
# Kernels
# ----------------------------------------------------------------------------
def _ln_relu(out, p):
    """LayerNorm (two-pass, biased variance) + affine + ReLU.  out: (bm,S) f32,
    p: (3,S) f32 packed [fc2 bias, ln gamma, ln beta]."""
    mean = jnp.mean(out, axis=-1, keepdims=True)
    centered = out - mean
    var = jnp.mean(centered * centered, axis=-1, keepdims=True)
    y = centered * lax.rsqrt(var + LN_EPS)
    y = y * p[1:2, :] + p[2:3, :]
    return jnp.maximum(y, 0.0)


def _fused_kernel(x_ref, w2_ref, params_ref, o_ref):
    """grid_k == 1: weight fully resident, no accumulator scratch / RMW."""
    x = x_ref[...]
    p = params_ref[...]
    out = jnp.dot(x.astype(w2_ref.dtype), w2_ref[...],
                  preferred_element_type=jnp.float32)
    out = out + p[0:1, :] + x.astype(jnp.float32)      # fc2 bias + residual
    o_ref[...] = _ln_relu(out, p).astype(o_ref.dtype)


def _ktiled_kernel(x_ref, w2_ref, params_ref, o_ref, acc_ref, *maybe_xcast,
                   block_k, cast_x):
    """grid_k > 1: weight streamed in (block_k, S) slabs, f32 accumulator."""
    k = pl.program_id(1)
    xcast_ref = maybe_xcast[0] if cast_x else None

    @pl.when(k == 0)
    def _init():
        acc_ref[...] = jnp.zeros_like(acc_ref)
        if cast_x:
            # Cast the resident x tile once, instead of per K step in the loop.
            xcast_ref[...] = x_ref[...].astype(xcast_ref.dtype)

    x_src = xcast_ref if cast_x else x_ref
    start = pl.multiple_of(k * block_k, block_k)
    x_blk = x_src[:, pl.ds(start, block_k)]
    acc_ref[...] += jnp.dot(x_blk.astype(w2_ref.dtype), w2_ref[...],
                            preferred_element_type=jnp.float32)

    @pl.when(k == pl.num_programs(1) - 1)
    def _finalize():
        p = params_ref[...]
        out = acc_ref[...] + p[0:1, :] + x_ref[...].astype(jnp.float32)
        o_ref[...] = _ln_relu(out, p).astype(o_ref.dtype)


# ----------------------------------------------------------------------------
# Tiling heuristics (generation-aware, joint VMEM budget)
# ----------------------------------------------------------------------------
@functools.lru_cache(maxsize=1)
def _hw_vmem_bytes():
    try:
        return max(int(pltpu.get_tpu_info().vmem_capacity_bytes), 64 << 20)
    except Exception:
        return 64 << 20  # conservative: assume v7x-class (64 MiB per TC)


def _choose_tiling(B, S, x_itemsize, out_itemsize, w_itemsize,
                   block_m, block_k, single_buffer_params, cast_x_possible):
    vmem_cap = _hw_vmem_bytes()
    two_tc = vmem_cap <= (96 << 20)            # v7x-class: 64 MiB/TC, 2 TCs/chip
    # Joint usable budget, leaving headroom for compiler-internal scratch.
    cap = (52 << 20) if two_tc else (100 << 20)

    # Sublane packing: 8 rows/vreg for 32-bit, 16 for 16-bit dtypes.
    m_align = max(32 // x_itemsize, 32 // out_itemsize)
    param_bytes = 2 * 3 * S * 4                # packed (3,S) f32 params
    w_res_buffers = 1 if single_buffer_params else 2

    # ---- K (weight) tiling ----
    if block_k is None:
        min_act = m_align * 2 * S * (x_itemsize + out_itemsize)
        if (S % 128 != 0
                or w_res_buffers * S * S * w_itemsize + param_bytes + min_act <= cap):
            block_k = S                        # whole weight resident (common case)
        else:
            bk_floor = 256 if S % 256 == 0 else 128   # feed the 256-deep MXU
            w_budget = cap // 2                # double-buffered weight slabs
            chosen = None
            cand = ((S // bk_floor) - 1) * bk_floor
            while cand >= bk_floor:
                if S % cand == 0 and 2 * cand * S * w_itemsize <= w_budget:
                    chosen = cand
                    break
                cand -= bk_floor
            block_k = chosen if chosen is not None else bk_floor

    grid_k = pl.cdiv(S, block_k)
    ktiled = grid_k > 1
    cast_x = ktiled and cast_x_possible

    w_footprint = (2 * block_k * S * w_itemsize if ktiled
                   else w_res_buffers * S * S * w_itemsize)

    per_row = (2 * S * x_itemsize + 2 * S * out_itemsize      # x / out (dbl-buf)
               + (S * 4 if ktiled else 0)                     # f32 accumulator
               + (S * w_itemsize if cast_x else 0))           # bf16 x scratch

    # ---- M (batch-row) tiling: as large as the joint budget allows ----
    if block_m is None:
        act_budget = max(cap - w_footprint - param_bytes, m_align * per_row)
        bm = act_budget // per_row
        if bm >= B:
            bm = B
            if two_tc and B >= 2 * m_align:
                # Only on 2-TC parts: give the second TensorCore an m-tile.
                half = B // 2
                bm = (half // 128) * 128 if half >= 128 else (half // m_align) * m_align
        else:
            bm = (bm // 128) * 128 if bm >= 128 else (bm // m_align) * m_align
        block_m = int(max(m_align, min(bm, B))) if B >= m_align else B

    vmem_est = w_footprint + param_bytes + block_m * per_row
    hard_cap = vmem_cap - ((8 if two_tc else 16) << 20)
    vmem_limit = int(min(hard_cap, max(32 << 20, vmem_est * 3 // 2 + (2 << 20))))

    return block_m, block_k, cast_x, vmem_limit


# ----------------------------------------------------------------------------
# Wrapper
# ----------------------------------------------------------------------------
@functools.partial(
    jax.jit,
    static_argnames=("block_m", "block_k", "matmul_dtype", "single_buffer_params"))
def residual_block(x, w2_t, b2, gamma, beta, *,
                   block_m=None, block_k=None,
                   matmul_dtype=jnp.bfloat16,
                   single_buffer_params=True):
    B, S = x.shape
    assert w2_t.shape == (S, S)

    mm_dtype = jnp.dtype(matmul_dtype)
    w_itemsize = int(mm_dtype.itemsize)
    x_itemsize = int(jnp.dtype(x.dtype).itemsize)
    out_itemsize = x_itemsize                         # output matches input dtype
    cast_x_possible = jnp.dtype(x.dtype) != mm_dtype

    block_m, block_k, cast_x, vmem_limit = _choose_tiling(
        B, S, x_itemsize, out_itemsize, w_itemsize,
        block_m, block_k, single_buffer_params, cast_x_possible)

    grid_m = pl.cdiv(B, block_m)
    grid_k = pl.cdiv(S, block_k)

    # MXU operands in mm_dtype (bf16 default: ~2x MXU rate, half the weight
    # DMA/VMEM); accumulation, residual, LayerNorm and ReLU stay in f32.
    w2_t = w2_t.astype(mm_dtype)
    params = jnp.stack([b2, gamma, beta]).astype(jnp.float32)   # (3, S)

    w_stream_passes = grid_m if grid_k > 1 else 1
    cost = pl.CostEstimate(
        flops=2 * B * S * S + 10 * B * S,
        transcendentals=B,                                       # one rsqrt per row
        bytes_accessed=(B * S * x_itemsize
                        + w_stream_passes * S * S * w_itemsize
                        + 3 * S * 4
                        + B * S * out_itemsize))

    if grid_k == 1:
        # ---- fused path: weight fully resident, 1-D grid over m ----
        def cspec(shape):
            if single_buffer_params:
                return pl.BlockSpec(shape, lambda i: (0, 0),
                                    pipeline_mode=pl.Buffered(1))
            return pl.BlockSpec(shape, lambda i: (0, 0))

        kernel = _fused_kernel
        grid = (grid_m,)
        dims = ("parallel",)
        in_specs = [
            pl.BlockSpec((block_m, S), lambda i: (i, 0)),   # x
            cspec((S, S)),                                  # W2^T (resident)
            cspec((3, S)),                                  # packed b2/gamma/beta
        ]
        out_spec = pl.BlockSpec((block_m, S), lambda i: (i, 0))
        scratch = []
    else:
        # ---- K-tiled path: weight streamed, f32 accumulator, k axis last ----
        def cspec(shape):
            if single_buffer_params:
                return pl.BlockSpec(shape, lambda i, k: (0, 0),
                                    pipeline_mode=pl.Buffered(1))
            return pl.BlockSpec(shape, lambda i, k: (0, 0))

        kernel = functools.partial(_ktiled_kernel, block_k=block_k, cast_x=cast_x)
        grid = (grid_m, grid_k)
        dims = ("parallel", "arbitrary")
        in_specs = [
            pl.BlockSpec((block_m, S), lambda i, k: (i, 0)),  # x (resident over k)
            pl.BlockSpec((block_k, S), lambda i, k: (k, 0)),  # W2^T slab (dbl-buf)
            cspec((3, S)),                                    # packed params
        ]
        out_spec = pl.BlockSpec((block_m, S), lambda i, k: (i, 0))
        scratch = [pltpu.VMEM((block_m, S), jnp.float32)]     # f32 accumulator
        if cast_x:
            scratch.append(pltpu.VMEM((block_m, S), mm_dtype))  # x cast once

    return pl.pallas_call(
        kernel,
        out_shape=jax.ShapeDtypeStruct((B, S), x.dtype),
        grid_spec=pltpu.PrefetchScalarGridSpec(
            num_scalar_prefetch=0,
            grid=grid,
            in_specs=in_specs,
            out_specs=out_spec,
            scratch_shapes=scratch),
        compiler_params=pltpu.CompilerParams(
            dimension_semantics=dims,
            vmem_limit_bytes=vmem_limit),
        cost_estimate=cost,
    )(x, w2_t, params)


# ----------------------------------------------------------------------------
# Reference & demo
# ----------------------------------------------------------------------------
def reference(x, w2_t, b2, gamma, beta):
    out = x @ w2_t + b2
    out = out + x
    mean = out.mean(-1, keepdims=True)
    var = ((out - mean) ** 2).mean(-1, keepdims=True)
    normed = (out - mean) / jnp.sqrt(var + LN_EPS)
    return jnp.maximum(normed * gamma + beta, 0.0)


if __name__ == "__main__":
    B, S = 64, 256   # batch rows, feature size (nn.Linear(size, size), size=256)

    key = jax.random.PRNGKey(0)
    kx, kw1, kb1, kw2, kb2 = jax.random.split(key, 5)

    x = jax.random.normal(kx, (B, S), dtype=jnp.float32)

    bound = 1.0 / (S ** 0.5)   # mimics nn.Linear init uniform(-1/sqrt(S), 1/sqrt(S))
    # fc1 params exist in the module but never affect the output (dead code).
    _w1 = jax.random.uniform(kw1, (S, S), jnp.float32, -bound, bound)
    _b1 = jax.random.uniform(kb1, (S,), jnp.float32, -bound, bound)
    w2 = jax.random.uniform(kw2, (S, S), jnp.float32, -bound, bound)   # (out, in)
    b2 = jax.random.uniform(kb2, (S,), jnp.float32, -bound, bound)
    gamma = jnp.ones((S,), jnp.float32)   # nn.LayerNorm default weight
    beta = jnp.zeros((S,), jnp.float32)   # nn.LayerNorm default bias

    w2_t = w2.T   # (S_in, S_out) so the kernel computes x @ W2^T

    ref = reference(x, w2_t, b2, gamma, beta)

    def run(**kw):
        try:
            return jax.block_until_ready(
                residual_block(x, w2_t, b2, gamma, beta, **kw))
        except Exception:
            # pipeline_mode=pl.Buffered(1) unsupported on this jax build ->
            # fall back to default double-buffered params (still correct).
            return jax.block_until_ready(
                residual_block(x, w2_t, b2, gamma, beta,
                               single_buffer_params=False, **kw))

    # f32 MXU-operand fused path (exact).
    out_f32 = run(matmul_dtype=jnp.float32)
    assert jnp.allclose(out_f32, ref, atol=1e-5, rtol=1e-5), "f32 fused mismatch"

    # Default bf16 MXU-operand fused path: looser tolerance.
    out_bf16 = run()
    assert jnp.allclose(out_bf16, ref, atol=5e-2, rtol=5e-2), "bf16 fused mismatch"

    # Forced K-tiled path (block_k=128 -> grid_k=2) to exercise the accumulator
    # kernel: f32 (no x-cast scratch) and bf16 (with x-cast scratch).
    out_kt_f32 = run(matmul_dtype=jnp.float32, block_k=128)
    assert jnp.allclose(out_kt_f32, ref, atol=1e-5, rtol=1e-5), "f32 ktiled mismatch"

    out_kt_bf16 = run(block_k=128)
    assert jnp.allclose(out_kt_bf16, ref, atol=5e-2, rtol=5e-2), "bf16 ktiled mismatch"

    print("KERNEL_OK")
</pallas_src>

<mosaic_0001>
module attributes {stable_mosaic.version = 11 : i64} {
  func.func @_fused_kernel(%arg0: i32, %arg1: memref<32x256xf32, #tpu.memory_space<vmem>>, %arg2: memref<256x256xf32, #tpu.memory_space<vmem>>, %arg3: memref<3x256xf32, #tpu.memory_space<vmem>>, %arg4: memref<32x256xf32, #tpu.memory_space<vmem>>) attributes {dimension_semantics = [#tpu.dimension_semantics<parallel>], iteration_bounds = array<i64: 2>, scalar_prefetch = 0 : i64, scratch_operands = 0 : i64, tpu.core_type = #tpu.core_type<tc>, window_params = [{transform_indices = @transform_0, window_bounds = array<i64: 32, 256>}, {pipeline_mode = #tpu.pipeline_mode<synchronous>, transform_indices = @transform_1, window_bounds = array<i64: 256, 256>}, {pipeline_mode = #tpu.pipeline_mode<synchronous>, transform_indices = @transform_2, window_bounds = array<i64: 3, 256>}, {transform_indices = @transform_3, window_bounds = array<i64: 32, 256>}]} {
    %c0 = arith.constant 0 : index
    %c0_0 = arith.constant 0 : index
    %0 = vector.load %arg1[%c0, %c0_0] : memref<32x256xf32, #tpu.memory_space<vmem>>, vector<32x256xf32>
    %c0_1 = arith.constant 0 : index
    %c0_2 = arith.constant 0 : index
    %1 = vector.load %arg3[%c0_1, %c0_2] : memref<3x256xf32, #tpu.memory_space<vmem>>, vector<3x256xf32>
    %c0_3 = arith.constant 0 : index
    %c0_4 = arith.constant 0 : index
    %2 = vector.load %arg2[%c0_3, %c0_4] : memref<256x256xf32, #tpu.memory_space<vmem>>, vector<256x256xf32>
    %cst = arith.constant dense<0.000000e+00> : vector<32x256xf32>
    %3 = tpu.matmul %0, %2, %cst {dimension_numbers = #tpu.dot_dimension_numbers<[1], [0], [0], [1], [0, 0, 1, 1], [], []>} : vector<32x256xf32>, vector<256x256xf32>, vector<32x256xf32> -> vector<32x256xf32>
    %4 = vector.extract_strided_slice %1 {offsets = [0, 0], sizes = [1, 256], strides = [1, 1]} : vector<3x256xf32> to vector<1x256xf32>
    %5 = vector.broadcast %4 : vector<1x256xf32> to vector<32x256xf32>
    %6 = arith.addf %3, %5 : vector<32x256xf32>
    %7 = arith.addf %6, %0 : vector<32x256xf32>
    %cst_5 = arith.constant dense<0.000000e+00> : vector<32xf32>
    %8 = vector.multi_reduction <add>, %7, %cst_5 [1] : vector<32x256xf32> to vector<32xf32>
    %9 = vector.shape_cast %8 : vector<32xf32> to vector<32x1xf32>
    %cst_6 = arith.constant 2.560000e+02 : f32
    %10 = vector.broadcast %cst_6 : f32 to vector<32x1xf32>
    %11 = arith.divf %9, %10 : vector<32x1xf32>
    %12 = vector.broadcast %11 : vector<32x1xf32> to vector<32x256xf32>
    %13 = arith.subf %7, %12 : vector<32x256xf32>
    %14 = arith.mulf %13, %13 : vector<32x256xf32>
    %cst_7 = arith.constant dense<0.000000e+00> : vector<32xf32>
    %15 = vector.multi_reduction <add>, %14, %cst_7 [1] : vector<32x256xf32> to vector<32xf32>
    %16 = vector.shape_cast %15 : vector<32xf32> to vector<32x1xf32>
    %cst_8 = arith.constant 2.560000e+02 : f32
    %17 = vector.broadcast %cst_8 : f32 to vector<32x1xf32>
    %18 = arith.divf %16, %17 : vector<32x1xf32>
    %cst_9 = arith.constant 9.99999974E-6 : f32
    %19 = vector.broadcast %cst_9 : f32 to vector<32x1xf32>
    %20 = arith.addf %18, %19 : vector<32x1xf32>
    %21 = math.rsqrt %20 : vector<32x1xf32>
    %22 = vector.broadcast %21 : vector<32x1xf32> to vector<32x256xf32>
    %23 = arith.mulf %13, %22 : vector<32x256xf32>
    %24 = vector.extract_strided_slice %1 {offsets = [1, 0], sizes = [1, 256], strides = [1, 1]} : vector<3x256xf32> to vector<1x256xf32>
    %25 = vector.broadcast %24 : vector<1x256xf32> to vector<32x256xf32>
    %26 = arith.mulf %23, %25 : vector<32x256xf32>
    %27 = vector.extract_strided_slice %1 {offsets = [2, 0], sizes = [1, 256], strides = [1, 1]} : vector<3x256xf32> to vector<1x256xf32>
    %28 = vector.broadcast %27 : vector<1x256xf32> to vector<32x256xf32>
    %29 = arith.addf %26, %28 : vector<32x256xf32>
    %cst_10 = arith.constant 0.000000e+00 : f32
    %30 = vector.broadcast %cst_10 : f32 to vector<32x256xf32>
    %31 = arith.maximumf %29, %30 : vector<32x256xf32>
    %c0_11 = arith.constant 0 : index
    %c0_12 = arith.constant 0 : index
    %32 = vector.load %arg4[%c0_11, %c0_12] : memref<32x256xf32, #tpu.memory_space<vmem>>, vector<32x256xf32>
    tpu.vector_store %arg4[%c0_11, %c0_12], %31 {strides = array<i32>} : memref<32x256xf32, #tpu.memory_space<vmem>>, vector<32x256xf32>,
    return
  }
  func.func @transform_0(%arg0: i32) -> (i32, i32) {
    %c0_i32 = arith.constant 0 : i32
    %c0_i32_0 = arith.constant 0 : i32
    return %arg0, %c0_i32 : i32, i32
  }
  func.func @transform_1(%arg0: i32) -> (i32, i32) {
    %c0_i32 = arith.constant 0 : i32
    %c0_i32_0 = arith.constant 0 : i32
    %c0_i32_1 = arith.constant 0 : i32
    return %c0_i32, %c0_i32_0 : i32, i32
  }
  func.func @transform_2(%arg0: i32) -> (i32, i32) {
    %c0_i32 = arith.constant 0 : i32
    %c0_i32_0 = arith.constant 0 : i32
    %c0_i32_1 = arith.constant 0 : i32
    return %c0_i32, %c0_i32_0 : i32, i32
  }
  func.func @transform_3(%arg0: i32) -> (i32, i32) {
    %c0_i32 = arith.constant 0 : i32
    %c0_i32_0 = arith.constant 0 : i32
    return %arg0, %c0_i32 : i32, i32
  }
}

module attributes {stable_mosaic.version = 11 : i64} {
  func.func @_fused_kernel(%arg0: i32, %arg1: memref<32x256xf32, #tpu.memory_space<vmem>>, %arg2: memref<256x256xf32, #tpu.memory_space<vmem>>, %arg3: memref<3x256xf32, #tpu.memory_space<vmem>>, %arg4: memref<32x256xf32, #tpu.memory_space<vmem>>) attributes {dimension_semantics = [#tpu.dimension_semantics<parallel>], iteration_bounds = array<i64: 2>, scalar_prefetch = 0 : i64, scratch_operands = 0 : i64, tpu.core_type = #tpu.core_type<tc>, window_params = [{transform_indices = @transform_0, window_bounds = array<i64: 32, 256>}, {pipeline_mode = #tpu.pipeline_mode<synchronous>, transform_indices = @transform_1, window_bounds = array<i64: 256, 256>}, {pipeline_mode = #tpu.pipeline_mode<synchronous>, transform_indices = @transform_2, window_bounds = array<i64: 3, 256>}, {transform_indices = @transform_3, window_bounds = array<i64: 32, 256>}]} {
    %c0 = arith.constant 0 : index
    %c0_0 = arith.constant 0 : index
    %0 = vector.load %arg1[%c0, %c0_0] : memref<32x256xf32, #tpu.memory_space<vmem>>, vector<32x256xf32>
    %c0_1 = arith.constant 0 : index
    %c0_2 = arith.constant 0 : index
    %1 = vector.load %arg3[%c0_1, %c0_2] : memref<3x256xf32, #tpu.memory_space<vmem>>, vector<3x256xf32>
    %c0_3 = arith.constant 0 : index
    %c0_4 = arith.constant 0 : index
    %2 = vector.load %arg2[%c0_3, %c0_4] : memref<256x256xf32, #tpu.memory_space<vmem>>, vector<256x256xf32>
    %cst = arith.constant dense<0.000000e+00> : vector<32x256xf32>
    %3 = tpu.matmul %0, %2, %cst {dimension_numbers = #tpu.dot_dimension_numbers<[1], [0], [0], [1], [0, 0, 1, 1], [], []>} : vector<32x256xf32>, vector<256x256xf32>, vector<32x256xf32> -> vector<32x256xf32>
    %4 = vector.extract_strided_slice %1 {offsets = [0, 0], sizes = [1, 256], strides = [1, 1]} : vector<3x256xf32> to vector<1x256xf32>
    %5 = vector.broadcast %4 : vector<1x256xf32> to vector<32x256xf32>
    %6 = arith.addf %3, %5 : vector<32x256xf32>
    %7 = arith.addf %6, %0 : vector<32x256xf32>
    %cst_5 = arith.constant dense<0.000000e+00> : vector<32xf32>
    %8 = vector.multi_reduction <add>, %7, %cst_5 [1] : vector<32x256xf32> to vector<32xf32>
    %9 = vector.shape_cast %8 : vector<32xf32> to vector<32x1xf32>
    %cst_6 = arith.constant 2.560000e+02 : f32
    %10 = vector.broadcast %cst_6 : f32 to vector<32x1xf32>
    %11 = arith.divf %9, %10 : vector<32x1xf32>
    %12 = vector.broadcast %11 : vector<32x1xf32> to vector<32x256xf32>
    %13 = arith.subf %7, %12 : vector<32x256xf32>
    %14 = arith.mulf %13, %13 : vector<32x256xf32>
    %cst_7 = arith.constant dense<0.000000e+00> : vector<32xf32>
    %15 = vector.multi_reduction <add>, %14, %cst_7 [1] : vector<32x256xf32> to vector<32xf32>
    %16 = vector.shape_cast %15 : vector<32xf32> to vector<32x1xf32>
    %cst_8 = arith.constant 2.560000e+02 : f32
    %17 = vector.broadcast %cst_8 : f32 to vector<32x1xf32>
    %18 = arith.divf %16, %17 : vector<32x1xf32>
    %cst_9 = arith.constant 9.99999974E-6 : f32
    %19 = vector.broadcast %cst_9 : f32 to vector<32x1xf32>
    %20 = arith.addf %18, %19 : vector<32x1xf32>
    %21 = math.rsqrt %20 : vector<32x1xf32>
    %22 = vector.broadcast %21 : vector<32x1xf32> to vector<32x256xf32>
    %23 = arith.mulf %13, %22 : vector<32x256xf32>
    %24 = vector.extract_strided_slice %1 {offsets = [1, 0], sizes = [1, 256], strides = [1, 1]} : vector<3x256xf32> to vector<1x256xf32>
    %25 = vector.broadcast %24 : vector<1x256xf32> to vector<32x256xf32>
    %26 = arith.mulf %23, %25 : vector<32x256xf32>
    %27 = vector.extract_strided_slice %1 {offsets = [2, 0], sizes = [1, 256], strides = [1, 1]} : vector<3x256xf32> to vector<1x256xf32>
    %28 = vector.broadcast %27 : vector<1x256xf32> to vector<32x256xf32>
    %29 = arith.addf %26, %28 : vector<32x256xf32>
    %cst_10 = arith.constant 0.000000e+00 : f32
    %30 = vector.broadcast %cst_10 : f32 to vector<32x256xf32>
    %31 = arith.maximumf %29, %30 : vector<32x256xf32>
    %c0_11 = arith.constant 0 : index
    %c0_12 = arith.constant 0 : index
    %32 = vector.load %arg4[%c0_11, %c0_12] : memref<32x256xf32, #tpu.memory_space<vmem>>, vector<32x256xf32>
    tpu.vector_store %arg4[%c0_11, %c0_12], %31 {strides = array<i32>} : memref<32x256xf32, #tpu.memory_space<vmem>>, vector<32x256xf32>,
    return
  }
  func.func @transform_0(%arg0: i32) -> (i32, i32) {
    %c0_i32 = arith.constant 0 : i32
    %c0_i32_0 = arith.constant 0 : i32
    return %arg0, %c0_i32 : i32, i32
  }
  func.func @transform_1(%arg0: i32) -> (i32, i32) {
    %c0_i32 = arith.constant 0 : i32
    %c0_i32_0 = arith.constant 0 : i32
    %c0_i32_1 = arith.constant 0 : i32
    return %c0_i32, %c0_i32_0 : i32, i32
  }
  func.func @transform_2(%arg0: i32) -> (i32, i32) {
    %c0_i32 = arith.constant 0 : i32
    %c0_i32_0 = arith.constant 0 : i32
    %c0_i32_1 = arith.constant 0 : i32
    return %c0_i32, %c0_i32_0 : i32, i32
  }
  func.func @transform_3(%arg0: i32) -> (i32, i32) {
    %c0_i32 = arith.constant 0 : i32
    %c0_i32_0 = arith.constant 0 : i32
    return %arg0, %c0_i32 : i32, i32
  }
}

</mosaic_0001>

<llo_original>
// kernel: residual_block.1
$region0: #{residual_block.1}
  #allocation0 [shape = 'u32[]', space=smem, size = 0x4, offset = 0x4, fixed_abs, tag = 'smem constant byte address 0x4 - core index']
  #allocation1 [shape = 'u32[144,128]{1,0:T(1,128)}', space=vmem, size = 0x12000, scoped, tag = 'internal scratch']
  %s0 = inlined_call_operand.hbm [shape: f32[64,256], index: 0, kind: input, shape index: {}]
  %s1 = inlined_call_operand.hbm [shape: f32[256,256], index: 1, kind: input, shape index: {}]
  %s2 = inlined_call_operand.vmem [shape: f32[3,256], index: 2, kind: input, shape index: {}]
  %s3 = inlined_call_operand.hbm [shape: f32[64,256], index: 3, kind: output, shape index: {}]
  %s4 = sld [smem:[#allocation0]]
  $region53: #{residual_block.1} parent=0
    _
  %s6 = ssub.s32 1, %s4
  %s7 = scalar_select 0, %s6, %s4
  $region1: #{residual_block.1} parent=0
    #allocation2 [shape = 'u8[65536]{0}', space=vmem, size = 0x10000, scoped, tag = 'input window, operand 0']
    #allocation3 [shape = 's32[2]{0}', space=sflag, size = 0x8, scoped, tag = 'scoped memory for residual_block.1']
    #allocation4 [shape = 's32[2]{0}', space=sflag, size = 0x8, scoped, tag = 'scoped memory for residual_block.1']
    #allocation5 [shape = 'u8[262144]{0}', space=vmem, size = 0x40000, scoped, tag = 'input window, operand 1, single buffered']
    #allocation6 [shape = 's32[1]{0}', space=sflag, size = 0x4, scoped, tag = 'scoped memory for residual_block.1']
    #allocation7 [shape = 'u8[65536]{0}', space=vmem, size = 0x10000, scoped, tag = 'output window, operand 0']
    %8 = vsyncpa [#allocation3], 0
    %s9 = scalar_lea.sflag [#allocation3], 1
    %10 = vsyncpa %s9, 0
    %11 = vsyncpa [#allocation6], 0
    %12 = vsyncpa [#allocation4], 0
    %s13 = scalar_lea.sflag [#allocation4], 1
    %14 = vsyncpa %s13, 0
    loop: start=0, step=1, limit=4
    $region2: #{residual_block.1} parent=1 // loop_pre_header
      _
    $region3: #{residual_block.1} parent=1 // loop_header
      %s16 = sphi 0, %s20
      %p17 = scmp.ge.s32.totalorder %s16, 4
      %s26 = sphi 0, %s28
      %s29 = sphi 0, %s26
      %s30 = sphi 0, %s29
      %s46 = sphi 0, %s30
      %s50 = sphi 0, %s50
      %s52 = sphi 0, %s50
      %s53 = sphi 0, %s52
      %s67 = sphi 0, %s53
      %s71 = sphi 0, %s71
      %s73 = sphi 0, %s71
      %s74 = sphi 0, %s73
      %s88 = sphi 0, %s74
      %s94 = sphi 0, %s96
      %s97 = sphi 0, %s94
      %s98 = sphi 0, %s97
      %s114 = sphi 0, %s98
    $region4: #{residual_block.1} parent=1 // loop_header_branch
      %19 = sbr.rel (%p17) target = $region8
    $region5: #{residual_block.1} parent=1 // loop_body
      %s21 = ssub.s32 %s16, 1
      %s22 = ssub.s32 %s16, 2
      %s23 = sadd.s32 %s16, 1
      %s24 = ssub.s32 %s16, %s23
      %p25 = scmp.eq.s32.totalorder %s24, 0
      %s27 = sadd.s32 %s26, 1
      %s28 = scalar_select %p25, %s26, %s27
      %p31 = pneg %p25
      %p32 = scmp.eq.s32.totalorder %s16, 1
      %p33 = por %p31, %p32
      %p34 = scmp.ne.s32.totalorder %s26, %s29
      %p35 = scmp.eq.s32.totalorder %s16, 0
      %p36 = por %p34, %p35
      %p37 = scmp.ne.s32.totalorder %s26, %s29
      %p38 = scmp.eq.s32.totalorder %s21, 1
      %p39 = por %p37, %p38
      %p40 = scmp.ne.s32.totalorder %s29, %s30
      %p41 = scmp.eq.s32.totalorder %s21, 0
      %p42 = por %p40, %p41
      %p43 = scmp.ne.s32.totalorder %s29, %s30
      %p44 = scmp.eq.s32.totalorder %s22, 1
      %p45 = por %p43, %p44
      %p47 = scmp.ne.s32.totalorder %s30, %s46
      %p48 = scmp.eq.s32.totalorder %s22, 0
      %p49 = por %p47, %p48
      %s51 = sadd.s32 %s50, 1
      %p54 = scmp.eq.s32.totalorder %s16, 1
      %p55 = scmp.ne.s32.totalorder %s50, %s52
      %p56 = scmp.eq.s32.totalorder %s16, 0
      %p57 = por %p55, %p56
      %p58 = scmp.ne.s32.totalorder %s50, %s52
      %p59 = scmp.eq.s32.totalorder %s21, 1
      %p60 = por %p58, %p59
      %p61 = scmp.ne.s32.totalorder %s52, %s53
      %p62 = scmp.eq.s32.totalorder %s21, 0
      %p63 = por %p61, %p62
      %p64 = scmp.ne.s32.totalorder %s52, %s53
      %p65 = scmp.eq.s32.totalorder %s22, 1
      %p66 = por %p64, %p65
      %p68 = scmp.ne.s32.totalorder %s53, %s67
      %p69 = scmp.eq.s32.totalorder %s22, 0
      %p70 = por %p68, %p69
      %s72 = sadd.s32 %s71, 1
      %p75 = scmp.eq.s32.totalorder %s16, 1
      %p76 = scmp.ne.s32.totalorder %s71, %s73
      %p77 = scmp.eq.s32.totalorder %s16, 0
      %p78 = por %p76, %p77
      %p79 = scmp.ne.s32.totalorder %s71, %s73
      %p80 = scmp.eq.s32.totalorder %s21, 1
      %p81 = por %p79, %p80
      %p82 = scmp.ne.s32.totalorder %s73, %s74
      %p83 = scmp.eq.s32.totalorder %s21, 0
      %p84 = por %p82, %p83
      %p85 = scmp.ne.s32.totalorder %s73, %s74
      %p86 = scmp.eq.s32.totalorder %s22, 1
      %p87 = por %p85, %p86
      %p89 = scmp.ne.s32.totalorder %s74, %s88
      %p90 = scmp.eq.s32.totalorder %s22, 0
      %p91 = por %p89, %p90
      %s92 = ssub.s32 %s16, %s23
      %p93 = scmp.eq.s32.totalorder %s92, 0
      %s95 = sadd.s32 %s94, 1
      %s96 = scalar_select %p93, %s94, %s95
      %p99 = pneg %p93
      %p100 = scmp.eq.s32.totalorder %s16, 1
      %p101 = por %p99, %p100
      %p102 = scmp.ne.s32.totalorder %s94, %s97
      %p103 = scmp.eq.s32.totalorder %s16, 0
      %p104 = por %p102, %p103
      %p105 = scmp.ne.s32.totalorder %s94, %s97
      %p106 = scmp.eq.s32.totalorder %s21, 1
      %p107 = por %p105, %p106
      %p108 = scmp.ne.s32.totalorder %s97, %s98
      %p109 = scmp.eq.s32.totalorder %s21, 0
      %p110 = por %p108, %p109
      %p111 = scmp.ne.s32.totalorder %s97, %s98
      %p112 = scmp.eq.s32.totalorder %s22, 1
      %p113 = por %p111, %p112
      %p115 = scmp.ne.s32.totalorder %s98, %s114
      %p116 = scmp.eq.s32.totalorder %s22, 0
      %p117 = por %p115, %p116
      %p118 = scmp.le.s32.totalorder 1, %s16
      %p119 = scmp.lt.s32.totalorder %s16, 3
      %p120 = pnand %p118, %p119
      %p121 = pneg %p120
      // Predicated region
      $region9: #{residual_block.1} parent=5 // pred_check
        _
      $region10: #{residual_block.1} parent=5 // pred_check_branch
        %123 = sbr.rel (%p120) target = $region12
      $region11: #{residual_block.1} parent=5 // pred_region
        %s124 = ssub.s32 %s16, 1
        // Predicated region
        $region13: #{residual_block.1} parent=11 // pred_check
          %p125 = pneg %p63
        $region14: #{residual_block.1} parent=11 // pred_check_branch
          %127 = sbr.rel (%p125) target = $region16
        $region15: #{residual_block.1} parent=11 // pred_region
          %s129 = ssub.s32 8192, 8192
          %130 = vsyncadd [#allocation6], %s129
          %s131 = sshll.u32 [#allocation5], 4
          %s132 = int_to_ptr.vmem [resolvable:$true] %s131
          %137 = dma.hbm_to_vmem [thread:$0]  %s1, 8192, %s132, [#allocation6], 256, 256, 16
        $region16: #{residual_block.1} parent=11 // pred_fallthru
          _
        // Predicated region
        $region17: #{residual_block.1} parent=11 // pred_check
          %p138 = pneg %p84
        $region18: #{residual_block.1} parent=11 // pred_check_branch
          %140 = sbr.rel (%p138) target = $region20
        $region19: #{residual_block.1} parent=11 // pred_region
          _
        $region20: #{residual_block.1} parent=11 // pred_fallthru
          _
      $region12: #{residual_block.1} parent=5 // pred_fallthru
        _
      %p141 = scmp.lt.s32.totalorder %s16, 2
      // Predicated region
      $region21: #{residual_block.1} parent=5 // pred_check
        %p142 = pneg %p141
      $region22: #{residual_block.1} parent=5 // pred_check_branch
        %144 = sbr.rel (%p142) target = $region24
      $region23: #{residual_block.1} parent=5 // pred_region
        // Predicated region
        $region25: #{residual_block.1} parent=23 // pred_check
          %p145 = pneg %p36
        $region26: #{residual_block.1} parent=23 // pred_check_branch
          %147 = sbr.rel (%p145) target = $region28
        $region27: #{residual_block.1} parent=23 // pred_region
          %s148 = sand.u32 %s26, 1
          %s149 = scalar_lea.sflag [#allocation3], %s148
          %s150 = sand.u32 %s26, 1
          %s151 = smul.addr %s150, 64
          %s152 = scalar_lea.vmem [#allocation2], %s151
          %s153 = smul.u32 4, %s16
          %s155 = ssub.s32 1024, 1024
          %156 = vsyncadd %s149, %s155
          %s157 = smul.addr %s153, 2
          %s158 = smul.addr %s157, 128
          %s159 = scalar_lea.hbm %s0, %s158
          %s160 = sshll.u32 %s152, 4
          %s161 = int_to_ptr.vmem [resolvable:$true] %s160
          %166 = dma.hbm_to_vmem [thread:$0]  %s159, 1024, %s161, %s149, 256, 256, 16
        $region28: #{residual_block.1} parent=23 // pred_fallthru
          _
      $region24: #{residual_block.1} parent=5 // pred_fallthru
        _
      %p167 = scmp.le.s32.totalorder 1, %s16
      %p168 = scmp.lt.s32.totalorder %s16, 3
      %p169 = pnand %p167, %p168
      %p170 = pneg %p169
      // Predicated region
      $region29: #{residual_block.1} parent=5 // pred_check
        _
      $region30: #{residual_block.1} parent=5 // pred_check_branch
        %172 = sbr.rel (%p169) target = $region32
      $region31: #{residual_block.1} parent=5 // pred_region
        %s173 = ssub.s32 %s16, 1
        %s174 = sand.u32 %s29, 1
        %s175 = scalar_lea.sflag [#allocation3], %s174
        %s176 = sand.u32 %s29, 1
        %s177 = smul.addr %s176, 64
        %s178 = scalar_lea.vmem [#allocation2], %s177
        // Predicated region
        $region33: #{residual_block.1} parent=31 // pred_check
          %p179 = pneg %p42
        $region34: #{residual_block.1} parent=31 // pred_check_branch
          %181 = sbr.rel (%p179) target = $region36
        $region35: #{residual_block.1} parent=31 // pred_region
          %182 = dma.done %s175, 1024
        $region36: #{residual_block.1} parent=31 // pred_fallthru
          _
        // Predicated region
        $region37: #{residual_block.1} parent=31 // pred_check
          %p183 = pneg %p63
        $region38: #{residual_block.1} parent=31 // pred_check_branch
          %185 = sbr.rel (%p183) target = $region40
        $region39: #{residual_block.1} parent=31 // pred_region
          %186 = dma.done [#allocation6], 8192
        $region40: #{residual_block.1} parent=31 // pred_fallthru
          _
        %s187 = sand.u32 %s29, 1
        %s188 = scalar_lea.sflag [#allocation3], %s187
        %s189 = sand.u32 %s29, 1
        %s190 = smul.addr %s189, 64
        %s191 = scalar_lea.vmem [#allocation2], %s190
        %p192 = pneg %p42
        %p193 = pneg %p39
        %p194 = pneg %p63
        %p195 = pneg %p60
        %p196 = pneg %p84
        %p197 = pneg %p81
        %p198 = pneg %p110
        %p199 = pneg %p107
        %s200 = sand.u32 %s97, 1
        %s201 = scalar_lea.sflag [#allocation4], %s200
        %s202 = sand.u32 %s97, 1
        %s203 = smul.addr %s202, 64
        %s204 = scalar_lea.vmem [#allocation7], %s203
        %s205 = smul.u32 4, %s21
        %s206 = smul.u32 4, %s21
        %v207 = vld [vmem:[%s178] sm:$0xff]
        %v208 = vld [vmem:[%s178 + $0x8] sm:$0xff]
        %v209 = vld [vmem:[%s178 + $0x10] sm:$0xff]
        %v210 = vld [vmem:[%s178 + $0x18] sm:$0xff]
        %v211 = vld [vmem:[%s178 + $0x20] sm:$0xff]
        %v212 = vld [vmem:[%s178 + $0x28] sm:$0xff]
        %v213 = vld [vmem:[%s178 + $0x30] sm:$0xff]
        %v214 = vld [vmem:[%s178 + $0x38] sm:$0xff]
        %v215 = vld [vmem:[%s2] sm:$0x77]
        %v216 = vld [vmem:[#allocation5] sm:$0xff]
        %v217 = vld [vmem:[#allocation5 + $0x8] sm:$0xff]
        %v218 = vld [vmem:[#allocation5 + $0x10] sm:$0xff]
        %v219 = vld [vmem:[#allocation5 + $0x18] sm:$0xff]
        %v220 = vld [vmem:[#allocation5 + $0x20] sm:$0xff]
        %v221 = vld [vmem:[#allocation5 + $0x28] sm:$0xff]
        %v222 = vld [vmem:[#allocation5 + $0x30] sm:$0xff]
        %v223 = vld [vmem:[#allocation5 + $0x38] sm:$0xff]
        %v224 = vld [vmem:[#allocation5 + $0x40] sm:$0xff]
        %v225 = vld [vmem:[#allocation5 + $0x48] sm:$0xff]
        %v226 = vld [vmem:[#allocation5 + $0x50] sm:$0xff]
        %v227 = vld [vmem:[#allocation5 + $0x58] sm:$0xff]
        %v228 = vld [vmem:[#allocation5 + $0x60] sm:$0xff]
        %v229 = vld [vmem:[#allocation5 + $0x68] sm:$0xff]
        %v230 = vld [vmem:[#allocation5 + $0x70] sm:$0xff]
        %v231 = vld [vmem:[#allocation5 + $0x78] sm:$0xff]
        %v232 = vld [vmem:[#allocation5 + $0x80] sm:$0xff]
        %v233 = vld [vmem:[#allocation5 + $0x88] sm:$0xff]
        %v234 = vld [vmem:[#allocation5 + $0x90] sm:$0xff]
        %v235 = vld [vmem:[#allocation5 + $0x98] sm:$0xff]
        %v236 = vld [vmem:[#allocation5 + $0xa0] sm:$0xff]
        %v237 = vld [vmem:[#allocation5 + $0xa8] sm:$0xff]
        %v238 = vld [vmem:[#allocation5 + $0xb0] sm:$0xff]
        %v239 = vld [vmem:[#allocation5 + $0xb8] sm:$0xff]
        %v240 = vld [vmem:[#allocation5 + $0xc0] sm:$0xff]
        %v241 = vld [vmem:[#allocation5 + $0xc8] sm:$0xff]
        %v242 = vld [vmem:[#allocation5 + $0xd0] sm:$0xff]
        %v243 = vld [vmem:[#allocation5 + $0xd8] sm:$0xff]
        %v244 = vld [vmem:[#allocation5 + $0xe0] sm:$0xff]
        %v245 = vld [vmem:[#allocation5 + $0xe8] sm:$0xff]
        %v246 = vld [vmem:[#allocation5 + $0xf0] sm:$0xff]
        %v247 = vld [vmem:[#allocation5 + $0xf8] sm:$0xff]
        %v248 = vld [vmem:[#allocation5 + $0x100] sm:$0xff]
        %v249 = vld [vmem:[#allocation5 + $0x108] sm:$0xff]
        %v250 = vld [vmem:[#allocation5 + $0x110] sm:$0xff]
        %v251 = vld [vmem:[#allocation5 + $0x118] sm:$0xff]
        %v252 = vld [vmem:[#allocation5 + $0x120] sm:$0xff]
        %v253 = vld [vmem:[#allocation5 + $0x128] sm:$0xff]
        %v254 = vld [vmem:[#allocation5 + $0x130] sm:$0xff]
        %v255 = vld [vmem:[#allocation5 + $0x138] sm:$0xff]
        %v256 = vld [vmem:[#allocation5 + $0x140] sm:$0xff]
        %v257 = vld [vmem:[#allocation5 + $0x148] sm:$0xff]
        %v258 = vld [vmem:[#allocation5 + $0x150] sm:$0xff]
        %v259 = vld [vmem:[#allocation5 + $0x158] sm:$0xff]
        %v260 = vld [vmem:[#allocation5 + $0x160] sm:$0xff]
        %v261 = vld [vmem:[#allocation5 + $0x168] sm:$0xff]
        %v262 = vld [vmem:[#allocation5 + $0x170] sm:$0xff]
        %v263 = vld [vmem:[#allocation5 + $0x178] sm:$0xff]
        %v264 = vld [vmem:[#allocation5 + $0x180] sm:$0xff]
        %v265 = vld [vmem:[#allocation5 + $0x188] sm:$0xff]
        %v266 = vld [vmem:[#allocation5 + $0x190] sm:$0xff]
        %v267 = vld [vmem:[#allocation5 + $0x198] sm:$0xff]
        %v268 = vld [vmem:[#allocation5 + $0x1a0] sm:$0xff]
        %v269 = vld [vmem:[#allocation5 + $0x1a8] sm:$0xff]
        %v270 = vld [vmem:[#allocation5 + $0x1b0] sm:$0xff]
        %v271 = vld [vmem:[#allocation5 + $0x1b8] sm:$0xff]
        %v272 = vld [vmem:[#allocation5 + $0x1c0] sm:$0xff]
        %v273 = vld [vmem:[#allocation5 + $0x1c8] sm:$0xff]
        %v274 = vld [vmem:[#allocation5 + $0x1d0] sm:$0xff]
        %v275 = vld [vmem:[#allocation5 + $0x1d8] sm:$0xff]
        %v276 = vld [vmem:[#allocation5 + $0x1e0] sm:$0xff]
        %v277 = vld [vmem:[#allocation5 + $0x1e8] sm:$0xff]
        %v278 = vld [vmem:[#allocation5 + $0x1f0] sm:$0xff]
        %v279 = vld [vmem:[#allocation5 + $0x1f8] sm:$0xff]
        %v281 = vlaneseq
        %v282 = vshrl.u32 %v281, 7
        %v283 = vsub.s32 0, %v282
        %v284 = vrot.slane %v215, %v283
        %v285 = vlaneseq
        %v286 = vshrl.u32 %v285, 7
        %v287 = vsub.s32 4, %v286
        %v288 = vrot.slane %v215, %v287
        %v291 = vlaneseq
        %v292 = vshrl.u32 %v291, 7
        %v293 = vsub.s32 0, %v292
        %v294 = vrot.slane %v284, %v293
        %v295 = vlaneseq
        %v296 = vshrl.u32 %v295, 7
        %v297 = vsub.s32 0, %v296
        %v298 = vrot.slane %v288, %v297
        %299 = vmatprep.subr.mxu0 %v217
        %300 = vmatpush1.msra.mxu0 %v216
        %301 = vmatprep.subr.mxu0 %v219
        %302 = vmatpush1.msra.mxu0 %v218
        %303 = vmatprep.subr.mxu0 %v221
        %304 = vmatpush1.msra.mxu0 %v220
        %305 = vmatprep.subr.mxu0 %v223
        %306 = vmatpush1.msra.mxu0 %v222
        %307 = vmatprep.subr.mxu0 %v225
        %308 = vmatpush1.msra.mxu0 %v224
        %309 = vmatprep.subr.mxu0 %v227
        %310 = vmatpush1.msra.mxu0 %v226
        %311 = vmatprep.subr.mxu0 %v229
        %312 = vmatpush1.msra.mxu0 %v228
        %313 = vmatprep.subr.mxu0 %v231
        %314 = vmatpush1.msra.mxu0 %v230
        %315 = vmatprep.subr.mxu0 %v233
        %316 = vmatpush1.msra.mxu0 %v232
        %317 = vmatprep.subr.mxu0 %v235
        %318 = vmatpush1.msra.mxu0 %v234
        %319 = vmatprep.subr.mxu0 %v237
        %320 = vmatpush1.msra.mxu0 %v236
        %321 = vmatprep.subr.mxu0 %v239
        %322 = vmatpush1.msra.mxu0 %v238
        %323 = vmatprep.subr.mxu0 %v241
        %324 = vmatpush1.msra.mxu0 %v240
        %325 = vmatprep.subr.mxu0 %v243
        %326 = vmatpush1.msra.mxu0 %v242
        %327 = vmatprep.subr.mxu0 %v245
        %328 = vmatpush1.msra.mxu0 %v244
        %329 = vmatprep.subr.mxu0 %v247
        %330 = vmatpush1.msra.mxu0 %v246
        %331 = vmatprep.subr.mxu0 %v249
        %332 = vmatpush1.msra.mxu0 %v248
        %333 = vmatprep.subr.mxu0 %v251
        %334 = vmatpush1.msra.mxu0 %v250
        %335 = vmatprep.subr.mxu0 %v253
        %336 = vmatpush1.msra.mxu0 %v252
        %337 = vmatprep.subr.mxu0 %v255
        %338 = vmatpush1.msra.mxu0 %v254
        %339 = vmatprep.subr.mxu0 %v257
        %340 = vmatpush1.msra.mxu0 %v256
        %341 = vmatprep.subr.mxu0 %v259
        %342 = vmatpush1.msra.mxu0 %v258
        %343 = vmatprep.subr.mxu0 %v261
        %344 = vmatpush1.msra.mxu0 %v260
        %345 = vmatprep.subr.mxu0 %v263
        %346 = vmatpush1.msra.mxu0 %v262
        %347 = vmatprep.subr.mxu0 %v265
        %348 = vmatpush1.msra.mxu0 %v264
        %349 = vmatprep.subr.mxu0 %v267
        %350 = vmatpush1.msra.mxu0 %v266
        %351 = vmatprep.subr.mxu0 %v269
        %352 = vmatpush1.msra.mxu0 %v268
        %353 = vmatprep.subr.mxu0 %v271
        %354 = vmatpush1.msra.mxu0 %v270
        %355 = vmatprep.subr.mxu0 %v273
        %356 = vmatpush1.msra.mxu0 %v272
        %357 = vmatprep.subr.mxu0 %v275
        %358 = vmatpush1.msra.mxu0 %v274
        %359 = vmatprep.subr.mxu0 %v277
        %360 = vmatpush1.msra.mxu0 %v276
        %361 = vmatprep.subr.mxu0 %v279
        %362 = vmatpush1.msra.mxu0 %v278
        %363 = vmatprep.mubr.f32.mxu0 %v208
        %364 = vmatmul.mubr.f32.gmra.mrb[0].mxu0 %v207
        %v365 = vpop.f32.mrb[0].mxu0
        %v366 = vadd.f32 %v294, %v365
        %v367 = vpop.f32.mrb[0].mxu0
        %v368 = vadd.f32 %v298, %v367
        %369 = vmatprep.mubr.f32.mxu0 %v210
        %370 = vmatmul.mubr.f32.gmra.mrb[0].mxu0 %v209
        %v371 = vpop.f32.mrb[0].mxu0
        %v372 = vadd.f32 %v294, %v371
        %v373 = vpop.f32.mrb[0].mxu0
        %v374 = vadd.f32 %v298, %v373
        %375 = vmatprep.mubr.f32.mxu0 %v212
        %376 = vmatmul.mubr.f32.gmra.mrb[0].mxu0 %v211
        %v377 = vpop.f32.mrb[0].mxu0
        %v378 = vadd.f32 %v294, %v377
        %v379 = vpop.f32.mrb[0].mxu0
        %v380 = vadd.f32 %v298, %v379
        %381 = vmatprep.mubr.f32.mxu0 %v214
        %382 = vmatmul.mubr.f32.gmra.mrb[0].mxu0 %v213
        %v383 = vpop.f32.mrb[0].mxu0
        %v384 = vadd.f32 %v294, %v383
        %v385 = vpop.f32.mrb[0].mxu0
        %v386 = vadd.f32 %v298, %v385
        %387 = vdwg.mxu0
        %v388 = vadd.f32 %v366, %v207
        %v389 = vadd.f32 %v368, %v208
        %v390 = vadd.f32 %v372, %v209
        %v391 = vadd.f32 %v374, %v210
        %v392 = vadd.f32 %v378, %v211
        %v393 = vadd.f32 %v380, %v212
        %v394 = vadd.f32 %v384, %v213
        %v395 = vadd.f32 %v386, %v214
        %v396 = vadd.f32 %v388, %v389
        %397 = vadd.xlane.f32.xlu0 %v396
        %v398 = vpop.xlane.xlu0 %397
        %v399 = vadd.f32 %v390, %v391
        %400 = vadd.xlane.f32.xlu0 %v399
        %v401 = vpop.xlane.xlu0 %400
        %v402 = vadd.f32 %v392, %v393
        %403 = vadd.xlane.f32.xlu0 %v402
        %v404 = vpop.xlane.xlu0 %403
        %v405 = vadd.f32 %v394, %v395
        %406 = vadd.xlane.f32.xlu0 %v405
        %v407 = vpop.xlane.xlu0 %406
        %v408 = vrcp.pop 256.0
        %v409 = vmul.f32 %v398, %v408
        %v410 = vmul.f32 %v401, %v408
        %v411 = vmul.f32 %v404, %v408
        %v412 = vmul.f32 %v407, %v408
        %v413 = vsub.f32 %v388, %v409
        %v414 = vsub.f32 %v389, %v409
        %v415 = vsub.f32 %v390, %v410
        %v416 = vsub.f32 %v391, %v410
        %v417 = vsub.f32 %v392, %v411
        %v418 = vsub.f32 %v393, %v411
        %v419 = vsub.f32 %v394, %v412
        %v420 = vsub.f32 %v395, %v412
        %v421 = vmul.f32 %v413, %v413
        %v422 = vmul.f32 %v414, %v414
        %v423 = vmul.f32 %v415, %v415
        %v424 = vmul.f32 %v416, %v416
        %v425 = vmul.f32 %v417, %v417
        %v426 = vmul.f32 %v418, %v418
        %v427 = vmul.f32 %v419, %v419
        %v428 = vmul.f32 %v420, %v420
        %v429 = vadd.f32 %v421, %v422
        %430 = vadd.xlane.f32.xlu0 %v429
        %v431 = vpop.xlane.xlu0 %430
        %v432 = vadd.f32 %v423, %v424
        %433 = vadd.xlane.f32.xlu0 %v432
        %v434 = vpop.xlane.xlu0 %433
        %v435 = vadd.f32 %v425, %v426
        %436 = vadd.xlane.f32.xlu0 %v435
        %v437 = vpop.xlane.xlu0 %436
        %v438 = vadd.f32 %v427, %v428
        %439 = vadd.xlane.f32.xlu0 %v438
        %v440 = vpop.xlane.xlu0 %439
        %v441 = vmul.f32 %v431, %v408
        %v442 = vmul.f32 %v434, %v408
        %v443 = vmul.f32 %v437, %v408
        %v444 = vmul.f32 %v440, %v408
        %v445 = vadd.f32 %v441, 1e-05
        %v446 = vadd.f32 %v442, 1e-05
        %v447 = vadd.f32 %v443, 1e-05
        %v448 = vadd.f32 %v444, 1e-05
        %v449 = vrsqrt.pop %v445
        %v450 = vrsqrt.pop %v446
        %v451 = vrsqrt.pop %v447
        %v452 = vrsqrt.pop %v448
        %v453 = vmul.f32 %v413, %v449
        %v454 = vmul.f32 %v414, %v449
        %v455 = vmul.f32 %v415, %v450
        %v456 = vmul.f32 %v416, %v450
        %v457 = vmul.f32 %v417, %v451
        %v458 = vmul.f32 %v418, %v451
        %v459 = vmul.f32 %v419, %v452
        %v460 = vmul.f32 %v420, %v452
        %v461 = vlaneseq
        %v462 = vshrl.u32 %v461, 7
        %v463 = vsub.s32 1, %v462
        %v464 = vrot.slane %v215, %v463
        %v465 = vlaneseq
        %v466 = vshrl.u32 %v465, 7
        %v467 = vsub.s32 5, %v466
        %v468 = vrot.slane %v215, %v467
        %v471 = vlaneseq
        %v472 = vshrl.u32 %v471, 7
        %v473 = vsub.s32 1, %v472
        %v474 = vrot.slane %v464, %v473
        %v475 = vlaneseq
        %v476 = vshrl.u32 %v475, 7
        %v477 = vsub.s32 1, %v476
        %v478 = vrot.slane %v468, %v477
        %v479 = vmul.f32 %v453, %v474
        %v480 = vmul.f32 %v454, %v478
        %v481 = vmul.f32 %v455, %v474
        %v482 = vmul.f32 %v456, %v478
        %v483 = vmul.f32 %v457, %v474
        %v484 = vmul.f32 %v458, %v478
        %v485 = vmul.f32 %v459, %v474
        %v486 = vmul.f32 %v460, %v478
        %v487 = vlaneseq
        %v488 = vshrl.u32 %v487, 7
        %v489 = vsub.s32 2, %v488
        %v490 = vrot.slane %v215, %v489
        %v491 = vlaneseq
        %v492 = vshrl.u32 %v491, 7
        %v493 = vsub.s32 6, %v492
        %v494 = vrot.slane %v215, %v493
        %v497 = vlaneseq
        %v498 = vshrl.u32 %v497, 7
        %v499 = vsub.s32 2, %v498
        %v500 = vrot.slane %v490, %v499
        %v501 = vlaneseq
        %v502 = vshrl.u32 %v501, 7
        %v503 = vsub.s32 2, %v502
        %v504 = vrot.slane %v494, %v503
        %v505 = vadd.f32 %v479, %v500
        %v506 = vadd.f32 %v480, %v504
        %v507 = vadd.f32 %v481, %v500
        %v508 = vadd.f32 %v482, %v504
        %v509 = vadd.f32 %v483, %v500
        %v510 = vadd.f32 %v484, %v504
        %v511 = vadd.f32 %v485, %v500
        %v512 = vadd.f32 %v486, %v504
        %v513 = vmax.f32 %v505, 0.0
        %v514 = vmax.f32 %v506, 0.0
        %v515 = vmax.f32 %v507, 0.0
        %v516 = vmax.f32 %v508, 0.0
        %v517 = vmax.f32 %v509, 0.0
        %v518 = vmax.f32 %v510, 0.0
        %v519 = vmax.f32 %v511, 0.0
        %v520 = vmax.f32 %v512, 0.0
        %521 = vst [vmem:[%s204] sm:$0xff] %v513
        %522 = vst [vmem:[%s204 + $0x8] sm:$0xff] %v514
        %523 = vst [vmem:[%s204 + $0x10] sm:$0xff] %v515
        %524 = vst [vmem:[%s204 + $0x18] sm:$0xff] %v516
        %525 = vst [vmem:[%s204 + $0x20] sm:$0xff] %v517
        %526 = vst [vmem:[%s204 + $0x28] sm:$0xff] %v518
        %527 = vst [vmem:[%s204 + $0x30] sm:$0xff] %v519
        %528 = vst [vmem:[%s204 + $0x38] sm:$0xff] %v520
        %s529 = sand.u32 %s97, 1
        %s530 = scalar_lea.sflag [#allocation4], %s529
        %s531 = sand.u32 %s97, 1
        %s532 = smul.addr %s531, 64
        %s533 = scalar_lea.vmem [#allocation7], %s532
        // Predicated region
        $region41: #{residual_block.1} parent=31 // pred_check
          %p534 = pneg %p107
        $region42: #{residual_block.1} parent=31 // pred_check_branch
          %536 = sbr.rel (%p534) target = $region44
        $region43: #{residual_block.1} parent=31 // pred_region
          %s537 = smul.u32 4, %s21
          %s539 = ssub.s32 1024, 1024
          %540 = vsyncadd %s530, %s539
          %s541 = smul.addr %s537, 2
          %s542 = smul.addr %s541, 128
          %s543 = scalar_lea.hbm %s3, %s542
          %s544 = sshll.u32 %s533, 4
          %s545 = int_to_ptr.vmem [resolvable:$true] %s544
          %550 = dma.vmem_to_hbm [thread:$0]  %s545, 1024, %s543, %s530, 256, 256, 16
        $region44: #{residual_block.1} parent=31 // pred_fallthru
          _
      $region32: #{residual_block.1} parent=5 // pred_fallthru
        _
      %p551 = scmp.le.s32.totalorder 2, %s16
      // Predicated region
      $region45: #{residual_block.1} parent=5 // pred_check
        %p552 = pneg %p551
      $region46: #{residual_block.1} parent=5 // pred_check_branch
        %554 = sbr.rel (%p552) target = $region48
      $region47: #{residual_block.1} parent=5 // pred_region
        %s555 = ssub.s32 %s16, 2
        // Predicated region
        $region49: #{residual_block.1} parent=47 // pred_check
          %p556 = pneg %p113
        $region50: #{residual_block.1} parent=47 // pred_check_branch
          %558 = sbr.rel (%p556) target = $region52
        $region51: #{residual_block.1} parent=47 // pred_region
          %s559 = sand.u32 %s98, 1
          %s560 = scalar_lea.sflag [#allocation4], %s559
          %s561 = sand.u32 %s98, 1
          %s562 = smul.addr %s561, 64
          %s563 = scalar_lea.vmem [#allocation7], %s562
          %564 = dma.done %s560, 1024
        $region52: #{residual_block.1} parent=47 // pred_fallthru
          _
      $region48: #{residual_block.1} parent=5 // pred_fallthru
        _
    $region6: #{residual_block.1} parent=1 // loop_footer
      %s20 = sadd.s32 1, %s16
    $region7: #{residual_block.1} parent=1 // loop_footer_branch
      %15 = sbr.rel target = $region3
    $region8: #{residual_block.1} parent=1 // loop_exit
      _
    %565 = vsyncpa [#allocation3], 1
    %s566 = scalar_lea.sflag [#allocation3], 1
    %567 = vsyncpa %s566, 1
    %568 = vsyncpa [#allocation6], 1
    %569 = vsyncpa [#allocation4], 1
    %s570 = scalar_lea.sflag [#allocation4], 1
    %571 = vsyncpa %s570, 1

// kernel: residual_block.1
$region0: #{residual_block.1}
  #allocation0 [shape = 'u32[]', space=smem, size = 0x4, offset = 0x4, fixed_abs, tag = 'smem constant byte address 0x4 - core index']
  #allocation1 [shape = 'u32[144,128]{1,0:T(1,128)}', space=vmem, size = 0x12000, scoped, tag = 'internal scratch']
  %s0 = inlined_call_operand.hbm [shape: f32[64,256], index: 0, kind: input, shape index: {}]
  %s1 = inlined_call_operand.hbm [shape: f32[256,256], index: 1, kind: input, shape index: {}]
  %s2 = inlined_call_operand.vmem [shape: f32[3,256], index: 2, kind: input, shape index: {}]
  %s3 = inlined_call_operand.hbm [shape: f32[64,256], index: 3, kind: output, shape index: {}]
  %s4 = sld [smem:[#allocation0]]
  $region53: #{residual_block.1} parent=0
    _
  %s6 = ssub.s32 1, %s4
  %s7 = scalar_select 0, %s6, %s4
  $region1: #{residual_block.1} parent=0
    #allocation2 [shape = 'u8[65536]{0}', space=vmem, size = 0x10000, scoped, tag = 'input window, operand 0']
    #allocation3 [shape = 's32[2]{0}', space=sflag, size = 0x8, scoped, tag = 'scoped memory for residual_block.1']
    #allocation4 [shape = 's32[2]{0}', space=sflag, size = 0x8, scoped, tag = 'scoped memory for residual_block.1']
    #allocation5 [shape = 'u8[262144]{0}', space=vmem, size = 0x40000, scoped, tag = 'input window, operand 1, single buffered']
    #allocation6 [shape = 's32[1]{0}', space=sflag, size = 0x4, scoped, tag = 'scoped memory for residual_block.1']
    #allocation7 [shape = 'u8[65536]{0}', space=vmem, size = 0x10000, scoped, tag = 'output window, operand 0']
    %8 = vsyncpa [#allocation3], 0
    %s9 = scalar_lea.sflag [#allocation3], 1
    %10 = vsyncpa %s9, 0
    %11 = vsyncpa [#allocation6], 0
    %12 = vsyncpa [#allocation4], 0
    %s13 = scalar_lea.sflag [#allocation4], 1
    %14 = vsyncpa %s13, 0
    loop: start=0, step=1, limit=4
    $region2: #{residual_block.1} parent=1 // loop_pre_header
      _
    $region3: #{residual_block.1} parent=1 // loop_header
      %s16 = sphi 0, %s20
      %p17 = scmp.ge.s32.totalorder %s16, 4
      %s26 = sphi 0, %s28
      %s29 = sphi 0, %s26
      %s30 = sphi 0, %s29
      %s46 = sphi 0, %s30
      %s50 = sphi 0, %s50
      %s52 = sphi 0, %s50
      %s53 = sphi 0, %s52
      %s67 = sphi 0, %s53
      %s71 = sphi 0, %s71
      %s73 = sphi 0, %s71
      %s74 = sphi 0, %s73
      %s88 = sphi 0, %s74
      %s94 = sphi 0, %s96
      %s97 = sphi 0, %s94
      %s98 = sphi 0, %s97
      %s114 = sphi 0, %s98
    $region4: #{residual_block.1} parent=1 // loop_header_branch
      %19 = sbr.rel (%p17) target = $region8
    $region5: #{residual_block.1} parent=1 // loop_body
      %s21 = ssub.s32 %s16, 1
      %s22 = ssub.s32 %s16, 2
      %s23 = sadd.s32 %s16, 1
      %s24 = ssub.s32 %s16, %s23
      %p25 = scmp.eq.s32.totalorder %s24, 0
      %s27 = sadd.s32 %s26, 1
      %s28 = scalar_select %p25, %s26, %s27
      %p31 = pneg %p25
      %p32 = scmp.eq.s32.totalorder %s16, 1
      %p33 = por %p31, %p32
      %p34 = scmp.ne.s32.totalorder %s26, %s29
      %p35 = scmp.eq.s32.totalorder %s16, 0
      %p36 = por %p34, %p35
      %p37 = scmp.ne.s32.totalorder %s26, %s29
      %p38 = scmp.eq.s32.totalorder %s21, 1
      %p39 = por %p37, %p38
      %p40 = scmp.ne.s32.totalorder %s29, %s30
      %p41 = scmp.eq.s32.totalorder %s21, 0
      %p42 = por %p40, %p41
      %p43 = scmp.ne.s32.totalorder %s29, %s30
      %p44 = scmp.eq.s32.totalorder %s22, 1
      %p45 = por %p43, %p44
      %p47 = scmp.ne.s32.totalorder %s30, %s46
      %p48 = scmp.eq.s32.totalorder %s22, 0
      %p49 = por %p47, %p48
      %s51 = sadd.s32 %s50, 1
      %p54 = scmp.eq.s32.totalorder %s16, 1
      %p55 = scmp.ne.s32.totalorder %s50, %s52
      %p56 = scmp.eq.s32.totalorder %s16, 0
      %p57 = por %p55, %p56
      %p58 = scmp.ne.s32.totalorder %s50, %s52
      %p59 = scmp.eq.s32.totalorder %s21, 1
      %p60 = por %p58, %p59
      %p61 = scmp.ne.s32.totalorder %s52, %s53
      %p62 = scmp.eq.s32.totalorder %s21, 0
      %p63 = por %p61, %p62
      %p64 = scmp.ne.s32.totalorder %s52, %s53
      %p65 = scmp.eq.s32.totalorder %s22, 1
      %p66 = por %p64, %p65
      %p68 = scmp.ne.s32.totalorder %s53, %s67
      %p69 = scmp.eq.s32.totalorder %s22, 0
      %p70 = por %p68, %p69
      %s72 = sadd.s32 %s71, 1
      %p75 = scmp.eq.s32.totalorder %s16, 1
      %p76 = scmp.ne.s32.totalorder %s71, %s73
      %p77 = scmp.eq.s32.totalorder %s16, 0
      %p78 = por %p76, %p77
      %p79 = scmp.ne.s32.totalorder %s71, %s73
      %p80 = scmp.eq.s32.totalorder %s21, 1
      %p81 = por %p79, %p80
      %p82 = scmp.ne.s32.totalorder %s73, %s74
      %p83 = scmp.eq.s32.totalorder %s21, 0
      %p84 = por %p82, %p83
      %p85 = scmp.ne.s32.totalorder %s73, %s74
      %p86 = scmp.eq.s32.totalorder %s22, 1
      %p87 = por %p85, %p86
      %p89 = scmp.ne.s32.totalorder %s74, %s88
      %p90 = scmp.eq.s32.totalorder %s22, 0
      %p91 = por %p89, %p90
      %s92 = ssub.s32 %s16, %s23
      %p93 = scmp.eq.s32.totalorder %s92, 0
      %s95 = sadd.s32 %s94, 1
      %s96 = scalar_select %p93, %s94, %s95
      %p99 = pneg %p93
      %p100 = scmp.eq.s32.totalorder %s16, 1
      %p101 = por %p99, %p100
      %p102 = scmp.ne.s32.totalorder %s94, %s97
      %p103 = scmp.eq.s32.totalorder %s16, 0
      %p104 = por %p102, %p103
      %p105 = scmp.ne.s32.totalorder %s94, %s97
      %p106 = scmp.eq.s32.totalorder %s21, 1
      %p107 = por %p105, %p106
      %p108 = scmp.ne.s32.totalorder %s97, %s98
      %p109 = scmp.eq.s32.totalorder %s21, 0
      %p110 = por %p108, %p109
      %p111 = scmp.ne.s32.totalorder %s97, %s98
      %p112 = scmp.eq.s32.totalorder %s22, 1
      %p113 = por %p111, %p112
      %p115 = scmp.ne.s32.totalorder %s98, %s114
      %p116 = scmp.eq.s32.totalorder %s22, 0
      %p117 = por %p115, %p116
      %p118 = scmp.le.s32.totalorder 1, %s16
      %p119 = scmp.lt.s32.totalorder %s16, 3
      %p120 = pnand %p118, %p119
      %p121 = pneg %p120
      // Predicated region
      $region9: #{residual_block.1} parent=5 // pred_check
        _
      $region10: #{residual_block.1} parent=5 // pred_check_branch
        %123 = sbr.rel (%p120) target = $region12
      $region11: #{residual_block.1} parent=5 // pred_region
        %s124 = ssub.s32 %s16, 1
        // Predicated region
        $region13: #{residual_block.1} parent=11 // pred_check
          %p125 = pneg %p63
        $region14: #{residual_block.1} parent=11 // pred_check_branch
          %127 = sbr.rel (%p125) target = $region16
        $region15: #{residual_block.1} parent=11 // pred_region
          %s129 = ssub.s32 8192, 8192
          %130 = vsyncadd [#allocation6], %s129
          %s131 = sshll.u32 [#allocation5], 4
          %s132 = int_to_ptr.vmem [resolvable:$true] %s131
          %137 = dma.hbm_to_vmem [thread:$0]  %s1, 8192, %s132, [#allocation6], 256, 256, 16
        $region16: #{residual_block.1} parent=11 // pred_fallthru
          _
        // Predicated region
        $region17: #{residual_block.1} parent=11 // pred_check
          %p138 = pneg %p84
        $region18: #{residual_block.1} parent=11 // pred_check_branch
          %140 = sbr.rel (%p138) target = $region20
        $region19: #{residual_block.1} parent=11 // pred_region
          _
        $region20: #{residual_block.1} parent=11 // pred_fallthru
          _
      $region12: #{residual_block.1} parent=5 // pred_fallthru
        _
      %p141 = scmp.lt.s32.totalorder %s16, 2
      // Predicated region
      $region21: #{residual_block.1} parent=5 // pred_check
        %p142 = pneg %p141
      $region22: #{residual_block.1} parent=5 // pred_check_branch
        %144 = sbr.rel (%p142) target = $region24
      $region23: #{residual_block.1} parent=5 // pred_region
        // Predicated region
        $region25: #{residual_block.1} parent=23 // pred_check
          %p145 = pneg %p36
        $region26: #{residual_block.1} parent=23 // pred_check_branch
          %147 = sbr.rel (%p145) target = $region28
        $region27: #{residual_block.1} parent=23 // pred_region
          %s148 = sand.u32 %s26, 1
          %s149 = scalar_lea.sflag [#allocation3], %s148
          %s150 = sand.u32 %s26, 1
          %s151 = smul.addr %s150, 64
          %s152 = scalar_lea.vmem [#allocation2], %s151
          %s153 = smul.u32 4, %s16
          %s155 = ssub.s32 1024, 1024
          %156 = vsyncadd %s149, %s155
          %s157 = smul.addr %s153, 2
          %s158 = smul.addr %s157, 128
          %s159 = scalar_lea.hbm %s0, %s158
          %s160 = sshll.u32 %s152, 4
          %s161 = int_to_ptr.vmem [resolvable:$true] %s160
          %166 = dma.hbm_to_vmem [thread:$0]  %s159, 1024, %s161, %s149, 256, 256, 16
        $region28: #{residual_block.1} parent=23 // pred_fallthru
          _
      $region24: #{residual_block.1} parent=5 // pred_fallthru
        _
      %p167 = scmp.le.s32.totalorder 1, %s16
      %p168 = scmp.lt.s32.totalorder %s16, 3
      %p169 = pnand %p167, %p168
      %p170 = pneg %p169
      // Predicated region
      $region29: #{residual_block.1} parent=5 // pred_check
        _
      $region30: #{residual_block.1} parent=5 // pred_check_branch
        %172 = sbr.rel (%p169) target = $region32
      $region31: #{residual_block.1} parent=5 // pred_region
        %s173 = ssub.s32 %s16, 1
        %s174 = sand.u32 %s29, 1
        %s175 = scalar_lea.sflag [#allocation3], %s174
        %s176 = sand.u32 %s29, 1
        %s177 = smul.addr %s176, 64
        %s178 = scalar_lea.vmem [#allocation2], %s177
        // Predicated region
        $region33: #{residual_block.1} parent=31 // pred_check
          %p179 = pneg %p42
        $region34: #{residual_block.1} parent=31 // pred_check_branch
          %181 = sbr.rel (%p179) target = $region36
        $region35: #{residual_block.1} parent=31 // pred_region
          %182 = dma.done %s175, 1024
        $region36: #{residual_block.1} parent=31 // pred_fallthru
          _
        // Predicated region
        $region37: #{residual_block.1} parent=31 // pred_check
          %p183 = pneg %p63
        $region38: #{residual_block.1} parent=31 // pred_check_branch
          %185 = sbr.rel (%p183) target = $region40
        $region39: #{residual_block.1} parent=31 // pred_region
          %186 = dma.done [#allocation6], 8192
        $region40: #{residual_block.1} parent=31 // pred_fallthru
          _
        %s187 = sand.u32 %s29, 1
        %s188 = scalar_lea.sflag [#allocation3], %s187
        %s189 = sand.u32 %s29, 1
        %s190 = smul.addr %s189, 64
        %s191 = scalar_lea.vmem [#allocation2], %s190
        %p192 = pneg %p42
        %p193 = pneg %p39
        %p194 = pneg %p63
        %p195 = pneg %p60
        %p196 = pneg %p84
        %p197 = pneg %p81
        %p198 = pneg %p110
        %p199 = pneg %p107
        %s200 = sand.u32 %s97, 1
        %s201 = scalar_lea.sflag [#allocation4], %s200
        %s202 = sand.u32 %s97, 1
        %s203 = smul.addr %s202, 64
        %s204 = scalar_lea.vmem [#allocation7], %s203
        %s205 = smul.u32 4, %s21
        %s206 = smul.u32 4, %s21
        %v207 = vld [vmem:[%s178] sm:$0xff]
        %v208 = vld [vmem:[%s178 + $0x8] sm:$0xff]
        %v209 = vld [vmem:[%s178 + $0x10] sm:$0xff]
        %v210 = vld [vmem:[%s178 + $0x18] sm:$0xff]
        %v211 = vld [vmem:[%s178 + $0x20] sm:$0xff]
        %v212 = vld [vmem:[%s178 + $0x28] sm:$0xff]
        %v213 = vld [vmem:[%s178 + $0x30] sm:$0xff]
        %v214 = vld [vmem:[%s178 + $0x38] sm:$0xff]
        %v215 = vld [vmem:[%s2] sm:$0x77]
        %v216 = vld [vmem:[#allocation5] sm:$0xff]
        %v217 = vld [vmem:[#allocation5 + $0x8] sm:$0xff]
        %v218 = vld [vmem:[#allocation5 + $0x10] sm:$0xff]
        %v219 = vld [vmem:[#allocation5 + $0x18] sm:$0xff]
        %v220 = vld [vmem:[#allocation5 + $0x20] sm:$0xff]
        %v221 = vld [vmem:[#allocation5 + $0x28] sm:$0xff]
        %v222 = vld [vmem:[#allocation5 + $0x30] sm:$0xff]
        %v223 = vld [vmem:[#allocation5 + $0x38] sm:$0xff]
        %v224 = vld [vmem:[#allocation5 + $0x40] sm:$0xff]
        %v225 = vld [vmem:[#allocation5 + $0x48] sm:$0xff]
        %v226 = vld [vmem:[#allocation5 + $0x50] sm:$0xff]
        %v227 = vld [vmem:[#allocation5 + $0x58] sm:$0xff]
        %v228 = vld [vmem:[#allocation5 + $0x60] sm:$0xff]
        %v229 = vld [vmem:[#allocation5 + $0x68] sm:$0xff]
        %v230 = vld [vmem:[#allocation5 + $0x70] sm:$0xff]
        %v231 = vld [vmem:[#allocation5 + $0x78] sm:$0xff]
        %v232 = vld [vmem:[#allocation5 + $0x80] sm:$0xff]
        %v233 = vld [vmem:[#allocation5 + $0x88] sm:$0xff]
        %v234 = vld [vmem:[#allocation5 + $0x90] sm:$0xff]
        %v235 = vld [vmem:[#allocation5 + $0x98] sm:$0xff]
        %v236 = vld [vmem:[#allocation5 + $0xa0] sm:$0xff]
        %v237 = vld [vmem:[#allocation5 + $0xa8] sm:$0xff]
        %v238 = vld [vmem:[#allocation5 + $0xb0] sm:$0xff]
        %v239 = vld [vmem:[#allocation5 + $0xb8] sm:$0xff]
        %v240 = vld [vmem:[#allocation5 + $0xc0] sm:$0xff]
        %v241 = vld [vmem:[#allocation5 + $0xc8] sm:$0xff]
        %v242 = vld [vmem:[#allocation5 + $0xd0] sm:$0xff]
        %v243 = vld [vmem:[#allocation5 + $0xd8] sm:$0xff]
        %v244 = vld [vmem:[#allocation5 + $0xe0] sm:$0xff]
        %v245 = vld [vmem:[#allocation5 + $0xe8] sm:$0xff]
        %v246 = vld [vmem:[#allocation5 + $0xf0] sm:$0xff]
        %v247 = vld [vmem:[#allocation5 + $0xf8] sm:$0xff]
        %v248 = vld [vmem:[#allocation5 + $0x100] sm:$0xff]
        %v249 = vld [vmem:[#allocation5 + $0x108] sm:$0xff]
        %v250 = vld [vmem:[#allocation5 + $0x110] sm:$0xff]
        %v251 = vld [vmem:[#allocation5 + $0x118] sm:$0xff]
        %v252 = vld [vmem:[#allocation5 + $0x120] sm:$0xff]
        %v253 = vld [vmem:[#allocation5 + $0x128] sm:$0xff]
        %v254 = vld [vmem:[#allocation5 + $0x130] sm:$0xff]
        %v255 = vld [vmem:[#allocation5 + $0x138] sm:$0xff]
        %v256 = vld [vmem:[#allocation5 + $0x140] sm:$0xff]
        %v257 = vld [vmem:[#allocation5 + $0x148] sm:$0xff]
        %v258 = vld [vmem:[#allocation5 + $0x150] sm:$0xff]
        %v259 = vld [vmem:[#allocation5 + $0x158] sm:$0xff]
        %v260 = vld [vmem:[#allocation5 + $0x160] sm:$0xff]
        %v261 = vld [vmem:[#allocation5 + $0x168] sm:$0xff]
        %v262 = vld [vmem:[#allocation5 + $0x170] sm:$0xff]
        %v263 = vld [vmem:[#allocation5 + $0x178] sm:$0xff]
        %v264 = vld [vmem:[#allocation5 + $0x180] sm:$0xff]
        %v265 = vld [vmem:[#allocation5 + $0x188] sm:$0xff]
        %v266 = vld [vmem:[#allocation5 + $0x190] sm:$0xff]
        %v267 = vld [vmem:[#allocation5 + $0x198] sm:$0xff]
        %v268 = vld [vmem:[#allocation5 + $0x1a0] sm:$0xff]
        %v269 = vld [vmem:[#allocation5 + $0x1a8] sm:$0xff]
        %v270 = vld [vmem:[#allocation5 + $0x1b0] sm:$0xff]
        %v271 = vld [vmem:[#allocation5 + $0x1b8] sm:$0xff]
        %v272 = vld [vmem:[#allocation5 + $0x1c0] sm:$0xff]
        %v273 = vld [vmem:[#allocation5 + $0x1c8] sm:$0xff]
        %v274 = vld [vmem:[#allocation5 + $0x1d0] sm:$0xff]
        %v275 = vld [vmem:[#allocation5 + $0x1d8] sm:$0xff]
        %v276 = vld [vmem:[#allocation5 + $0x1e0] sm:$0xff]
        %v277 = vld [vmem:[#allocation5 + $0x1e8] sm:$0xff]
        %v278 = vld [vmem:[#allocation5 + $0x1f0] sm:$0xff]
        %v279 = vld [vmem:[#allocation5 + $0x1f8] sm:$0xff]
        %v281 = vlaneseq
        %v282 = vshrl.u32 %v281, 7
        %v283 = vsub.s32 0, %v282
        %v284 = vrot.slane %v215, %v283
        %v285 = vlaneseq
        %v286 = vshrl.u32 %v285, 7
        %v287 = vsub.s32 4, %v286
        %v288 = vrot.slane %v215, %v287
        %v291 = vlaneseq
        %v292 = vshrl.u32 %v291, 7
        %v293 = vsub.s32 0, %v292
        %v294 = vrot.slane %v284, %v293
        %v295 = vlaneseq
        %v296 = vshrl.u32 %v295, 7
        %v297 = vsub.s32 0, %v296
        %v298 = vrot.slane %v288, %v297
        %299 = vmatprep.subr.mxu0 %v217
        %300 = vmatpush1.msra.mxu0 %v216
        %301 = vmatprep.subr.mxu0 %v219
        %302 = vmatpush1.msra.mxu0 %v218
        %303 = vmatprep.subr.mxu0 %v221
        %304 = vmatpush1.msra.mxu0 %v220
        %305 = vmatprep.subr.mxu0 %v223
        %306 = vmatpush1.msra.mxu0 %v222
        %307 = vmatprep.subr.mxu0 %v225
        %308 = vmatpush1.msra.mxu0 %v224
        %309 = vmatprep.subr.mxu0 %v227
        %310 = vmatpush1.msra.mxu0 %v226
        %311 = vmatprep.subr.mxu0 %v229
        %312 = vmatpush1.msra.mxu0 %v228
        %313 = vmatprep.subr.mxu0 %v231
        %314 = vmatpush1.msra.mxu0 %v230
        %315 = vmatprep.subr.mxu0 %v233
        %316 = vmatpush1.msra.mxu0 %v232
        %317 = vmatprep.subr.mxu0 %v235
        %318 = vmatpush1.msra.mxu0 %v234
        %319 = vmatprep.subr.mxu0 %v237
        %320 = vmatpush1.msra.mxu0 %v236
        %321 = vmatprep.subr.mxu0 %v239
        %322 = vmatpush1.msra.mxu0 %v238
        %323 = vmatprep.subr.mxu0 %v241
        %324 = vmatpush1.msra.mxu0 %v240
        %325 = vmatprep.subr.mxu0 %v243
        %326 = vmatpush1.msra.mxu0 %v242
        %327 = vmatprep.subr.mxu0 %v245
        %328 = vmatpush1.msra.mxu0 %v244
        %329 = vmatprep.subr.mxu0 %v247
        %330 = vmatpush1.msra.mxu0 %v246
        %331 = vmatprep.subr.mxu0 %v249
        %332 = vmatpush1.msra.mxu0 %v248
        %333 = vmatprep.subr.mxu0 %v251
        %334 = vmatpush1.msra.mxu0 %v250
        %335 = vmatprep.subr.mxu0 %v253
        %336 = vmatpush1.msra.mxu0 %v252
        %337 = vmatprep.subr.mxu0 %v255
        %338 = vmatpush1.msra.mxu0 %v254
        %339 = vmatprep.subr.mxu0 %v257
        %340 = vmatpush1.msra.mxu0 %v256
        %341 = vmatprep.subr.mxu0 %v259
        %342 = vmatpush1.msra.mxu0 %v258
        %343 = vmatprep.subr.mxu0 %v261
        %344 = vmatpush1.msra.mxu0 %v260
        %345 = vmatprep.subr.mxu0 %v263
        %346 = vmatpush1.msra.mxu0 %v262
        %347 = vmatprep.subr.mxu0 %v265
        %348 = vmatpush1.msra.mxu0 %v264
        %349 = vmatprep.subr.mxu0 %v267
        %350 = vmatpush1.msra.mxu0 %v266
        %351 = vmatprep.subr.mxu0 %v269
        %352 = vmatpush1.msra.mxu0 %v268
        %353 = vmatprep.subr.mxu0 %v271
        %354 = vmatpush1.msra.mxu0 %v270
        %355 = vmatprep.subr.mxu0 %v273
        %356 = vmatpush1.msra.mxu0 %v272
        %357 = vmatprep.subr.mxu0 %v275
        %358 = vmatpush1.msra.mxu0 %v274
        %359 = vmatprep.subr.mxu0 %v277
        %360 = vmatpush1.msra.mxu0 %v276
        %361 = vmatprep.subr.mxu0 %v279
        %362 = vmatpush1.msra.mxu0 %v278
        %363 = vmatprep.mubr.f32.mxu0 %v208
        %364 = vmatmul.mubr.f32.gmra.mrb[0].mxu0 %v207
        %v365 = vpop.f32.mrb[0].mxu0
        %v366 = vadd.f32 %v294, %v365
        %v367 = vpop.f32.mrb[0].mxu0
        %v368 = vadd.f32 %v298, %v367
        %369 = vmatprep.mubr.f32.mxu0 %v210
        %370 = vmatmul.mubr.f32.gmra.mrb[0].mxu0 %v209
        %v371 = vpop.f32.mrb[0].mxu0
        %v372 = vadd.f32 %v294, %v371
        %v373 = vpop.f32.mrb[0].mxu0
        %v374 = vadd.f32 %v298, %v373
        %375 = vmatprep.mubr.f32.mxu0 %v212
        %376 = vmatmul.mubr.f32.gmra.mrb[0].mxu0 %v211
        %v377 = vpop.f32.mrb[0].mxu0
        %v378 = vadd.f32 %v294, %v377
        %v379 = vpop.f32.mrb[0].mxu0
        %v380 = vadd.f32 %v298, %v379
        %381 = vmatprep.mubr.f32.mxu0 %v214
        %382 = vmatmul.mubr.f32.gmra.mrb[0].mxu0 %v213
        %v383 = vpop.f32.mrb[0].mxu0
        %v384 = vadd.f32 %v294, %v383
        %v385 = vpop.f32.mrb[0].mxu0
        %v386 = vadd.f32 %v298, %v385
        %387 = vdwg.mxu0
        %v388 = vadd.f32 %v366, %v207
        %v389 = vadd.f32 %v368, %v208
        %v390 = vadd.f32 %v372, %v209
        %v391 = vadd.f32 %v374, %v210
        %v392 = vadd.f32 %v378, %v211
        %v393 = vadd.f32 %v380, %v212
        %v394 = vadd.f32 %v384, %v213
        %v395 = vadd.f32 %v386, %v214
        %v396 = vadd.f32 %v388, %v389
        %397 = vadd.xlane.f32.xlu0 %v396
        %v398 = vpop.xlane.xlu0 %397
        %v399 = vadd.f32 %v390, %v391
        %400 = vadd.xlane.f32.xlu0 %v399
        %v401 = vpop.xlane.xlu0 %400
        %v402 = vadd.f32 %v392, %v393
        %403 = vadd.xlane.f32.xlu0 %v402
        %v404 = vpop.xlane.xlu0 %403
        %v405 = vadd.f32 %v394, %v395
        %406 = vadd.xlane.f32.xlu0 %v405
        %v407 = vpop.xlane.xlu0 %406
        %v408 = vrcp.pop 256.0
        %v409 = vmul.f32 %v398, %v408
        %v410 = vmul.f32 %v401, %v408
        %v411 = vmul.f32 %v404, %v408
        %v412 = vmul.f32 %v407, %v408
        %v413 = vsub.f32 %v388, %v409
        %v414 = vsub.f32 %v389, %v409
        %v415 = vsub.f32 %v390, %v410
        %v416 = vsub.f32 %v391, %v410
        %v417 = vsub.f32 %v392, %v411
        %v418 = vsub.f32 %v393, %v411
        %v419 = vsub.f32 %v394, %v412
        %v420 = vsub.f32 %v395, %v412
        %v421 = vmul.f32 %v413, %v413
        %v422 = vmul.f32 %v414, %v414
        %v423 = vmul.f32 %v415, %v415
        %v424 = vmul.f32 %v416, %v416
        %v425 = vmul.f32 %v417, %v417
        %v426 = vmul.f32 %v418, %v418
        %v427 = vmul.f32 %v419, %v419
        %v428 = vmul.f32 %v420, %v420
        %v429 = vadd.f32 %v421, %v422
        %430 = vadd.xlane.f32.xlu0 %v429
        %v431 = vpop.xlane.xlu0 %430
        %v432 = vadd.f32 %v423, %v424
        %433 = vadd.xlane.f32.xlu0 %v432
        %v434 = vpop.xlane.xlu0 %433
        %v435 = vadd.f32 %v425, %v426
        %436 = vadd.xlane.f32.xlu0 %v435
        %v437 = vpop.xlane.xlu0 %436
        %v438 = vadd.f32 %v427, %v428
        %439 = vadd.xlane.f32.xlu0 %v438
        %v440 = vpop.xlane.xlu0 %439
        %v441 = vmul.f32 %v431, %v408
        %v442 = vmul.f32 %v434, %v408
        %v443 = vmul.f32 %v437, %v408
        %v444 = vmul.f32 %v440, %v408
        %v445 = vadd.f32 %v441, 1e-05
        %v446 = vadd.f32 %v442, 1e-05
        %v447 = vadd.f32 %v443, 1e-05
        %v448 = vadd.f32 %v444, 1e-05
        %v449 = vrsqrt.pop %v445
        %v450 = vrsqrt.pop %v446
        %v451 = vrsqrt.pop %v447
        %v452 = vrsqrt.pop %v448
        %v453 = vmul.f32 %v413, %v449
        %v454 = vmul.f32 %v414, %v449
        %v455 = vmul.f32 %v415, %v450
        %v456 = vmul.f32 %v416, %v450
        %v457 = vmul.f32 %v417, %v451
        %v458 = vmul.f32 %v418, %v451
        %v459 = vmul.f32 %v419, %v452
        %v460 = vmul.f32 %v420, %v452
        %v461 = vlaneseq
        %v462 = vshrl.u32 %v461, 7
        %v463 = vsub.s32 1, %v462
        %v464 = vrot.slane %v215, %v463
        %v465 = vlaneseq
        %v466 = vshrl.u32 %v465, 7
        %v467 = vsub.s32 5, %v466
        %v468 = vrot.slane %v215, %v467
        %v471 = vlaneseq
        %v472 = vshrl.u32 %v471, 7
        %v473 = vsub.s32 1, %v472
        %v474 = vrot.slane %v464, %v473
        %v475 = vlaneseq
        %v476 = vshrl.u32 %v475, 7
        %v477 = vsub.s32 1, %v476
        %v478 = vrot.slane %v468, %v477
        %v479 = vmul.f32 %v453, %v474
        %v480 = vmul.f32 %v454, %v478
        %v481 = vmul.f32 %v455, %v474
        %v482 = vmul.f32 %v456, %v478
        %v483 = vmul.f32 %v457, %v474
        %v484 = vmul.f32 %v458, %v478
        %v485 = vmul.f32 %v459, %v474
        %v486 = vmul.f32 %v460, %v478
        %v487 = vlaneseq
        %v488 = vshrl.u32 %v487, 7
        %v489 = vsub.s32 2, %v488
        %v490 = vrot.slane %v215, %v489
        %v491 = vlaneseq
        %v492 = vshrl.u32 %v491, 7
        %v493 = vsub.s32 6, %v492
        %v494 = vrot.slane %v215, %v493
        %v497 = vlaneseq
        %v498 = vshrl.u32 %v497, 7
        %v499 = vsub.s32 2, %v498
        %v500 = vrot.slane %v490, %v499
        %v501 = vlaneseq
        %v502 = vshrl.u32 %v501, 7
        %v503 = vsub.s32 2, %v502
        %v504 = vrot.slane %v494, %v503
        %v505 = vadd.f32 %v479, %v500
        %v506 = vadd.f32 %v480, %v504
        %v507 = vadd.f32 %v481, %v500
        %v508 = vadd.f32 %v482, %v504
        %v509 = vadd.f32 %v483, %v500
        %v510 = vadd.f32 %v484, %v504
        %v511 = vadd.f32 %v485, %v500
        %v512 = vadd.f32 %v486, %v504
        %v513 = vmax.f32 %v505, 0.0
        %v514 = vmax.f32 %v506, 0.0
        %v515 = vmax.f32 %v507, 0.0
        %v516 = vmax.f32 %v508, 0.0
        %v517 = vmax.f32 %v509, 0.0
        %v518 = vmax.f32 %v510, 0.0
        %v519 = vmax.f32 %v511, 0.0
        %v520 = vmax.f32 %v512, 0.0
        %521 = vst [vmem:[%s204] sm:$0xff] %v513
        %522 = vst [vmem:[%s204 + $0x8] sm:$0xff] %v514
        %523 = vst [vmem:[%s204 + $0x10] sm:$0xff] %v515
        %524 = vst [vmem:[%s204 + $0x18] sm:$0xff] %v516
        %525 = vst [vmem:[%s204 + $0x20] sm:$0xff] %v517
        %526 = vst [vmem:[%s204 + $0x28] sm:$0xff] %v518
        %527 = vst [vmem:[%s204 + $0x30] sm:$0xff] %v519
        %528 = vst [vmem:[%s204 + $0x38] sm:$0xff] %v520
        %s529 = sand.u32 %s97, 1
        %s530 = scalar_lea.sflag [#allocation4], %s529
        %s531 = sand.u32 %s97, 1
        %s532 = smul.addr %s531, 64
        %s533 = scalar_lea.vmem [#allocation7], %s532
        // Predicated region
        $region41: #{residual_block.1} parent=31 // pred_check
          %p534 = pneg %p107
        $region42: #{residual_block.1} parent=31 // pred_check_branch
          %536 = sbr.rel (%p534) target = $region44
        $region43: #{residual_block.1} parent=31 // pred_region
          %s537 = smul.u32 4, %s21
          %s539 = ssub.s32 1024, 1024
          %540 = vsyncadd %s530, %s539
          %s541 = smul.addr %s537, 2
          %s542 = smul.addr %s541, 128
          %s543 = scalar_lea.hbm %s3, %s542
          %s544 = sshll.u32 %s533, 4
          %s545 = int_to_ptr.vmem [resolvable:$true] %s544
          %550 = dma.vmem_to_hbm [thread:$0]  %s545, 1024, %s543, %s530, 256, 256, 16
        $region44: #{residual_block.1} parent=31 // pred_fallthru
          _
      $region32: #{residual_block.1} parent=5 // pred_fallthru
        _
      %p551 = scmp.le.s32.totalorder 2, %s16
      // Predicated region
      $region45: #{residual_block.1} parent=5 // pred_check
        %p552 = pneg %p551
      $region46: #{residual_block.1} parent=5 // pred_check_branch
        %554 = sbr.rel (%p552) target = $region48
      $region47: #{residual_block.1} parent=5 // pred_region
        %s555 = ssub.s32 %s16, 2
        // Predicated region
        $region49: #{residual_block.1} parent=47 // pred_check
          %p556 = pneg %p113
        $region50: #{residual_block.1} parent=47 // pred_check_branch
          %558 = sbr.rel (%p556) target = $region52
        $region51: #{residual_block.1} parent=47 // pred_region
          %s559 = sand.u32 %s98, 1
          %s560 = scalar_lea.sflag [#allocation4], %s559
          %s561 = sand.u32 %s98, 1
          %s562 = smul.addr %s561, 64
          %s563 = scalar_lea.vmem [#allocation7], %s562
          %564 = dma.done %s560, 1024
        $region52: #{residual_block.1} parent=47 // pred_fallthru
          _
      $region48: #{residual_block.1} parent=5 // pred_fallthru
        _
    $region6: #{residual_block.1} parent=1 // loop_footer
      %s20 = sadd.s32 1, %s16
    $region7: #{residual_block.1} parent=1 // loop_footer_branch
      %15 = sbr.rel target = $region3
    $region8: #{residual_block.1} parent=1 // loop_exit
      _
    %565 = vsyncpa [#allocation3], 1
    %s566 = scalar_lea.sflag [#allocation3], 1
    %567 = vsyncpa %s566, 1
    %568 = vsyncpa [#allocation6], 1
    %569 = vsyncpa [#allocation4], 1
    %s570 = scalar_lea.sflag [#allocation4], 1
    %571 = vsyncpa %s570, 1

</llo_original>
